<compile_context>
chip_gen: v7x
topology: tpu7x:2x2x1
jax: 0.10.0
libtpu: 0.0.40
codegen_flags: <defaults>
</compile_context>

<pallas_src>
import math

import jax
import jax.numpy as jnp
from jax.experimental import pallas as pl
from jax.experimental.pallas import tpu as pltpu


def _iid_gather_kernel(samples_ref, lsm_ref, out_ref):
    """out[r, l] = lsm[samples[r, l], l].

    samples_ref : (TR, W) integer block of (reshaped) input samples (streamed).
    lsm_ref     : (NC, W) f32 resident table; row c holds the log-prob of choice c per lane.
    out_ref     : (TR, W) f32.
    """
    nc = lsm_ref.shape[0]
    s = samples_ref[...].astype(jnp.int32)          # widen on-tile (free if already int32)
    # Select chain: default to choice 0, overwrite where the sample says otherwise.
    out = jnp.broadcast_to(lsm_ref[0:1, :], s.shape)
    for c in range(1, nc):
        out = jnp.where(s == c, lsm_ref[c:c + 1, :], out)
    out_ref[...] = out


def _row_tile(num_rows, width, itemsize, target_bytes):
    """Largest row-tile (multiple of the sublane quantum) with ~target_bytes of f32 per block."""
    quantum = 8 * max(1, 4 // max(itemsize, 1))     # 8 rows for i32/f32, 16 for 16-bit, 32 for i8
    rows = max(target_bytes // (width * 4), quantum)
    rows = (rows // quantum) * quantum
    return num_rows if rows >= num_rows else rows


def iid_sampler_forward(input_samples, params, *,
                        block_target_bytes=2 * 1024 * 1024,
                        min_pallas_elems=1024):
    """input_samples: (B, D) ints in [0, n_choices).  Returns log_probs (B, D) float32."""
    B, D = input_samples.shape
    Dl, NC = params['logits'].shape
    assert Dl == D

    # Hoisted log_softmax over the tiny (D, NC) parameter (trivially cheap in XLA).
    lsm = jax.nn.log_softmax(params['logits'].astype(jnp.float32), axis=-1)   # (D, NC)

    samples = input_samples
    if (not jnp.issubdtype(samples.dtype, jnp.integer)) or samples.dtype.itemsize > 4:
        samples = samples.astype(jnp.int32)
    # (int8/int16/int32 samples are passed straight through — int8 saves HBM bandwidth.)

    # Tiny problems: launch/DMA overhead dominates -> fused XLA gather.
    if B * D < min_pallas_elems:
        return lsm[jnp.arange(D)[None, :], samples.astype(jnp.int32)]

    # Pick the working layout.
    if D % 128 == 0:
        R, W = B, D                                   # already lane-dense
        samples2 = samples
    else:
        W = math.lcm(D, 128)
        if (B * D) % W == 0 and W <= 8192:
            R = (B * D) // W                          # free row-major reshape to lane-dense rows
            samples2 = samples.reshape(R, W)
        else:
            R, W = B, D                               # fallback: direct (B, D) layout
            samples2 = samples

    # Per-lane log-prob table: lsm_w[c, l] = lsm[l % D, c]   (tiny: NC x W).
    lsm_w = jnp.tile(lsm.T, (1, W // D))              # (NC, W)

    TR = _row_tile(R, W, samples2.dtype.itemsize, block_target_bytes)
    grid = (pl.cdiv(R, TR),)

    out2 = pl.pallas_call(
        _iid_gather_kernel,
        out_shape=jax.ShapeDtypeStruct((R, W), jnp.float32),
        grid=grid,
        in_specs=[pl.BlockSpec((TR, W), lambda i: (i, 0)),    # samples: streamed over rows
                  pl.BlockSpec((NC, W), lambda i: (0, 0))],   # log-prob table: resident
        out_specs=pl.BlockSpec((TR, W), lambda i: (i, 0)),
        compiler_params=pltpu.CompilerParams(
            dimension_semantics=("parallel",)),               # v7x megacore shards the row axis
    )(samples2, lsm_w)

    return out2.reshape(B, D)


def ref_forward(input_samples, params):
    """Pure-JAX reference (mirrors the PyTorch forward with input_samples given)."""
    lsm = jax.nn.log_softmax(params['logits'].astype(jnp.float32), axis=-1)   # (D, NC)
    D = lsm.shape[0]
    return lsm[jnp.arange(D)[None, :], input_samples]                         # (B, D)


def make_params(key, n_choices, discrete_dim):
    k1, k2 = jax.random.split(key)

    def glorot(k, shape):
        lim = (6.0 / (shape[0] + shape[1])) ** 0.5
        return jax.random.uniform(k, shape, jnp.float32, -lim, lim)

    return dict(
        logits=glorot(k1, (discrete_dim, n_choices)),
        baselines=glorot(k2, (1, discrete_dim)),   # module parameter; unused in likelihood path
    )


def _check(name, out, expected):
    assert out.shape == expected.shape, (name, out.shape, expected.shape)
    assert jnp.allclose(out, expected, atol=1e-5, rtol=1e-5), (
        "%s: mismatch vs reference:\n%s\n%s" % (name, out, expected))


if __name__ == "__main__":
    key = jax.random.PRNGKey(0)

    cases = [
        # (name, batch, discrete_dim, n_choices, wrapper kwargs)
        ("tiny_jax_path",        8, 16, 4, {}),                                  # pure-JAX dispatch
        ("flattened_pallas",   256, 16, 4, {}),                                  # lane-dense kernel
        ("pipelined_pallas",  2048, 16, 4, dict(block_target_bytes=64 * 1024)),  # multi-step grid
        ("fallback_layout",    120, 12, 5, {}),                                  # direct (B, D) path
    ]
    for name, batch, ddim, nc, kwargs in cases:
        key, pkey, skey = jax.random.split(key, 3)
        params = make_params(pkey, nc, ddim)
        samples = jax.random.randint(skey, (batch, ddim), 0, nc, dtype=jnp.int32)
        out = jax.block_until_ready(iid_sampler_forward(samples, params, **kwargs))
        _check(name, out, ref_forward(samples, params))

    print("KERNEL_OK")
</pallas_src>

<mosaic_0001>
module attributes {stable_mosaic.version = 11 : i64} {
  func.func @_iid_gather_kernel(%arg0: i32, %arg1: memref<32x128xi32, #tpu.memory_space<vmem>>, %arg2: memref<4x128xf32, #tpu.memory_space<vmem>>, %arg3: memref<32x128xf32, #tpu.memory_space<vmem>>) attributes {dimension_semantics = [#tpu.dimension_semantics<parallel>], iteration_bounds = array<i64: 1>, scalar_prefetch = 0 : i64, scratch_operands = 0 : i64, tpu.core_type = #tpu.core_type<tc>, window_params = [{transform_indices = @transform_0, window_bounds = array<i64: 32, 128>}, {pipeline_mode = #tpu.pipeline_mode<synchronous>, transform_indices = @transform_1, window_bounds = array<i64: 4, 128>}, {transform_indices = @transform_2, window_bounds = array<i64: 32, 128>}]} {
    %c0 = arith.constant 0 : index
    %c0_0 = arith.constant 0 : index
    %0 = vector.load %arg1[%c0, %c0_0] : memref<32x128xi32, #tpu.memory_space<vmem>>, vector<32x128xi32>
    %c0_1 = arith.constant 0 : index
    %c0_2 = arith.constant 0 : index
    %1 = vector.load %arg2[%c0_1, %c0_2] : memref<4x128xf32, #tpu.memory_space<vmem>>, vector<1x128xf32>
    %2 = vector.shape_cast %1 : vector<1x128xf32> to vector<1x128xf32>
    %3 = vector.broadcast %2 : vector<1x128xf32> to vector<32x128xf32>
    %c1_i32 = arith.constant 1 : i32
    %4 = vector.broadcast %c1_i32 : i32 to vector<32x128xi32>
    %5 = arith.cmpi eq, %0, %4 : vector<32x128xi32>
    %c1 = arith.constant 1 : index
    %c0_3 = arith.constant 0 : index
    %6 = vector.load %arg2[%c1, %c0_3] : memref<4x128xf32, #tpu.memory_space<vmem>>, vector<1x128xf32>
    %7 = vector.shape_cast %6 : vector<1x128xf32> to vector<1x128xf32>
    %8 = vector.broadcast %7 : vector<1x128xf32> to vector<32x128xf32>
    %9 = arith.select %5, %8, %3 : vector<32x128xi1>, vector<32x128xf32>
    %c2_i32 = arith.constant 2 : i32
    %10 = vector.broadcast %c2_i32 : i32 to vector<32x128xi32>
    %11 = arith.cmpi eq, %0, %10 : vector<32x128xi32>
    %c2 = arith.constant 2 : index
    %c0_4 = arith.constant 0 : index
    %12 = vector.load %arg2[%c2, %c0_4] : memref<4x128xf32, #tpu.memory_space<vmem>>, vector<1x128xf32>
    %13 = vector.shape_cast %12 : vector<1x128xf32> to vector<1x128xf32>
    %14 = vector.broadcast %13 : vector<1x128xf32> to vector<32x128xf32>
    %15 = arith.select %11, %14, %9 : vector<32x128xi1>, vector<32x128xf32>
    %c3_i32 = arith.constant 3 : i32
    %16 = vector.broadcast %c3_i32 : i32 to vector<32x128xi32>
    %17 = arith.cmpi eq, %0, %16 : vector<32x128xi32>
    %c3 = arith.constant 3 : index
    %c0_5 = arith.constant 0 : index
    %18 = vector.load %arg2[%c3, %c0_5] : memref<4x128xf32, #tpu.memory_space<vmem>>, vector<1x128xf32>
    %19 = vector.shape_cast %18 : vector<1x128xf32> to vector<1x128xf32>
    %20 = vector.broadcast %19 : vector<1x128xf32> to vector<32x128xf32>
    %21 = arith.select %17, %20, %15 : vector<32x128xi1>, vector<32x128xf32>
    %c0_6 = arith.constant 0 : index
    %c0_7 = arith.constant 0 : index
    %22 = vector.load %arg3[%c0_6, %c0_7] : memref<32x128xf32, #tpu.memory_space<vmem>>, vector<32x128xf32>
    tpu.vector_store %arg3[%c0_6, %c0_7], %21 {strides = array<i32>} : memref<32x128xf32, #tpu.memory_space<vmem>>, vector<32x128xf32>,
    return
  }
  func.func @transform_0(%arg0: i32) -> (i32, i32) {
    %c0_i32 = arith.constant 0 : i32
    %c0_i32_0 = arith.constant 0 : i32
    return %arg0, %c0_i32 : i32, i32
  }
  func.func @transform_1(%arg0: i32) -> (i32, i32) {
    %c0_i32 = arith.constant 0 : i32
    %c0_i32_0 = arith.constant 0 : i32
    %c0_i32_1 = arith.constant 0 : i32
    return %c0_i32, %c0_i32_0 : i32, i32
  }
  func.func @transform_2(%arg0: i32) -> (i32, i32) {
    %c0_i32 = arith.constant 0 : i32
    %c0_i32_0 = arith.constant 0 : i32
    return %arg0, %c0_i32 : i32, i32
  }
}

</mosaic_0001>

<llo_original>
// kernel: tpu_custom_call.1
$region0: #{tpu_custom_call.1}
  #allocation0 [shape = 'u32[]', space=smem, size = 0x4, offset = 0x4, fixed_abs, tag = 'smem constant byte address 0x4 - core index']
  #allocation1 [shape = 'u32[144,128]{1,0:T(1,128)}', space=vmem, size = 0x12000, scoped, tag = 'internal scratch']
  %s0 = inlined_call_operand.hbm [shape: s32[32,128], index: 0, kind: input, shape index: {}]
  %s1 = inlined_call_operand.hbm [shape: f32[4,128], index: 1, kind: input, shape index: {}]
  %s2 = inlined_call_operand.hbm [shape: f32[32,128], index: 2, kind: output, shape index: {}]
  %s3 = sld [smem:[#allocation0]]
  $region26: #{tpu_custom_call.1} parent=0
    _
  %s5 = ssub.s32 1, %s3
  %s6 = scalar_select 0, %s5, %s3
  $region1: #{tpu_custom_call.1} parent=0
    #allocation2 [shape = 'u8[16384]{0}', space=vmem, size = 0x4000, scoped, tag = 'input window, operand 0, single buffered']
    #allocation3 [shape = 's32[1]{0}', space=sflag, size = 0x4, scoped, tag = 'scoped memory for tpu_custom_call.1']
    #allocation4 [shape = 's32[1]{0}', space=sflag, size = 0x4, scoped, tag = 'scoped memory for tpu_custom_call.1']
    #allocation5 [shape = 'u8[2048]{0}', space=vmem, size = 0x800, scoped, tag = 'input window, operand 1, single buffered']
    #allocation6 [shape = 's32[1]{0}', space=sflag, size = 0x4, scoped, tag = 'scoped memory for tpu_custom_call.1']
    #allocation7 [shape = 'u8[16384]{0}', space=vmem, size = 0x4000, scoped, tag = 'output window, operand 0, single buffered']
    %7 = vsyncpa [#allocation3], 0
    %8 = vsyncpa [#allocation6], 0
    %9 = vsyncpa [#allocation4], 0
    // Predicated region
    $region2: #{tpu_custom_call.1} parent=1 // pred_check
      _
    $region3: #{tpu_custom_call.1} parent=1 // pred_check_branch
      %11 = sbr.rel (0) target = $region5
    $region4: #{tpu_custom_call.1} parent=1 // pred_region
      %s13 = ssub.s32 512, 512
      %14 = vsyncadd [#allocation3], %s13
      %s15 = sshll.u32 [#allocation2], 4
      %s16 = int_to_ptr.vmem [resolvable:$true] %s15
      %21 = dma.hbm_to_vmem [thread:$0]  %s0, 512, %s16, [#allocation3], 128, 128, 8
    $region5: #{tpu_custom_call.1} parent=1 // pred_fallthru
      _
    // Predicated region
    $region6: #{tpu_custom_call.1} parent=1 // pred_check
      _
    $region7: #{tpu_custom_call.1} parent=1 // pred_check_branch
      %23 = sbr.rel (0) target = $region9
    $region8: #{tpu_custom_call.1} parent=1 // pred_region
      %s25 = ssub.s32 64, 64
      %26 = vsyncadd [#allocation6], %s25
      %s28 = sshll.u32 [#allocation5], 4
      %s29 = int_to_ptr.vmem [resolvable:$true] %s28
      %31 = dma.hbm_to_vmem [thread:$0]  %s1, 64, %s29, [#allocation6]
    $region9: #{tpu_custom_call.1} parent=1 // pred_fallthru
      _
    // Predicated region
    $region10: #{tpu_custom_call.1} parent=1 // pred_check
      _
    $region11: #{tpu_custom_call.1} parent=1 // pred_check_branch
      %33 = sbr.rel (0) target = $region13
    $region12: #{tpu_custom_call.1} parent=1 // pred_region
      %34 = dma.done [#allocation3], 512
    $region13: #{tpu_custom_call.1} parent=1 // pred_fallthru
      _
    // Predicated region
    $region14: #{tpu_custom_call.1} parent=1 // pred_check
      _
    $region15: #{tpu_custom_call.1} parent=1 // pred_check_branch
      %36 = sbr.rel (0) target = $region17
    $region16: #{tpu_custom_call.1} parent=1 // pred_region
      %37 = dma.done [#allocation6], 64
    $region17: #{tpu_custom_call.1} parent=1 // pred_fallthru
      _
    %v38 = vld [vmem:[#allocation2] sm:$0xff]
    %v39 = vld [vmem:[#allocation2 + $0x8] sm:$0xff]
    %v40 = vld [vmem:[#allocation2 + $0x10] sm:$0xff]
    %v41 = vld [vmem:[#allocation2 + $0x18] sm:$0xff]
    %v42 = vld [vmem:[#allocation5] sm:$0x1]
    %v43 = vlaneseq
    %v44 = vshrl.u32 %v43, 7
    %v45 = vsub.s32 0, %v44
    %v46 = vrot.slane %v42, %v45
    %vm47 = vcmp.eq.s32.totalorder %v38, 1
    %vm48 = vcmp.eq.s32.totalorder %v39, 1
    %vm49 = vcmp.eq.s32.totalorder %v40, 1
    %vm50 = vcmp.eq.s32.totalorder %v41, 1
    %v51 = vld [vmem:[#allocation5 + $0x1] sm:$0x1]
    %v52 = vlaneseq
    %v53 = vshrl.u32 %v52, 7
    %v54 = vsub.s32 0, %v53
    %v55 = vrot.slane %v51, %v54
    %v56 = vsel %vm47, %v55, %v46
    %v57 = vsel %vm48, %v55, %v46
    %v58 = vsel %vm49, %v55, %v46
    %v59 = vsel %vm50, %v55, %v46
    %vm60 = vcmp.eq.s32.totalorder %v38, 2
    %vm61 = vcmp.eq.s32.totalorder %v39, 2
    %vm62 = vcmp.eq.s32.totalorder %v40, 2
    %vm63 = vcmp.eq.s32.totalorder %v41, 2
    %v64 = vld [vmem:[#allocation5 + $0x2] sm:$0x1]
    %v65 = vlaneseq
    %v66 = vshrl.u32 %v65, 7
    %v67 = vsub.s32 0, %v66
    %v68 = vrot.slane %v64, %v67
    %v69 = vsel %vm60, %v68, %v56
    %v70 = vsel %vm61, %v68, %v57
    %v71 = vsel %vm62, %v68, %v58
    %v72 = vsel %vm63, %v68, %v59
    %vm73 = vcmp.eq.s32.totalorder %v38, 3
    %vm74 = vcmp.eq.s32.totalorder %v39, 3
    %vm75 = vcmp.eq.s32.totalorder %v40, 3
    %vm76 = vcmp.eq.s32.totalorder %v41, 3
    %v77 = vld [vmem:[#allocation5 + $0x3] sm:$0x1]
    %v78 = vlaneseq
    %v79 = vshrl.u32 %v78, 7
    %v80 = vsub.s32 0, %v79
    %v81 = vrot.slane %v77, %v80
    %v82 = vsel %vm73, %v81, %v69
    %v83 = vsel %vm74, %v81, %v70
    %v84 = vsel %vm75, %v81, %v71
    %v85 = vsel %vm76, %v81, %v72
    %86 = vst [vmem:[#allocation7] sm:$0xff] %v82
    %87 = vst [vmem:[#allocation7 + $0x8] sm:$0xff] %v83
    %88 = vst [vmem:[#allocation7 + $0x10] sm:$0xff] %v84
    %89 = vst [vmem:[#allocation7 + $0x18] sm:$0xff] %v85
    // Predicated region
    $region18: #{tpu_custom_call.1} parent=1 // pred_check
      _
    $region19: #{tpu_custom_call.1} parent=1 // pred_check_branch
      %91 = sbr.rel (0) target = $region21
    $region20: #{tpu_custom_call.1} parent=1 // pred_region
      %s93 = ssub.s32 512, 512
      %94 = vsyncadd [#allocation4], %s93
      %s95 = sshll.u32 [#allocation7], 4
      %s96 = int_to_ptr.vmem [resolvable:$true] %s95
      %101 = dma.vmem_to_hbm [thread:$0]  %s96, 512, %s2, [#allocation4], 128, 128, 8
    $region21: #{tpu_custom_call.1} parent=1 // pred_fallthru
      _
    // Predicated region
    $region22: #{tpu_custom_call.1} parent=1 // pred_check
      _
    $region23: #{tpu_custom_call.1} parent=1 // pred_check_branch
      %103 = sbr.rel (0) target = $region25
    $region24: #{tpu_custom_call.1} parent=1 // pred_region
      %104 = dma.done [#allocation4], 512
    $region25: #{tpu_custom_call.1} parent=1 // pred_fallthru
      _
    %105 = vsyncpa [#allocation3], 1
    %106 = vsyncpa [#allocation6], 1
    %107 = vsyncpa [#allocation4], 1

</llo_original>
